<compile_context>
chip_gen: v7x
topology: tpu7x:2x2x1
jax: 0.10.0
libtpu: 0.0.40
codegen_flags: <defaults>
</compile_context>

<pallas_src>
import numpy as np
import jax
import jax.numpy as jnp
from jax.experimental import pallas as pl
from jax.experimental.pallas import tpu as pltpu


def _gabor_kernel(coord_ref, x_ref, p_ref, o_ref, env_ref):
    # coord_ref: (D, TS)    coordinates of batch element 0 (envelope input == x[0])
    # x_ref:     (D, TS)    coordinates of the current batch element (linear input)
    # p_ref:     (C, 3D+1)  packed params [w | bias | sqrt(.5)*gamma | sqrt(.5)*gamma*mi]
    # o_ref:     (C, TS)    output tile (spatial on lanes -> lane-dense unmasked stores)
    # env_ref:   (C, TS)    f32 VMEM scratch caching the batch-invariant envelope
    D, TS = x_ref.shape
    b = pl.program_id(1)

    p = p_ref[...].astype(jnp.float32)
    w = p[:, 0:D]                        # (C, D)
    bias = p[:, D:D + 1]                 # (C, 1)
    gs = p[:, D + 1:2 * D + 1]           # (C, D)  sqrt(0.5) * gamma
    gms = p[:, 2 * D + 1:3 * D + 1]      # (C, D)  sqrt(0.5) * gamma * mi

    # Envelope depends only on x[0]: compute once per spatial tile (innermost batch
    # axis, b == 0) and reuse the cached result for all remaining batch elements.
    @pl.when(b == 0)
    def _():
        coord = coord_ref[...].astype(jnp.float32)
        t = gs[:, 0:1] * coord[0:1, :] - gms[:, 0:1]
        quad = -(t * t)
        for d in range(1, D):            # D is tiny & static -> unrolled VPU MACs
            t = gs[:, d:d + 1] * coord[d:d + 1, :] - gms[:, d:d + 1]
            quad = quad - t * t
        env_ref[...] = jnp.exp(quad)     # exp goes to the EUP

    x = x_ref[...].astype(jnp.float32)
    lin = w[:, 0:1] * x[0:1, :] + bias   # bias folded into the first MAC (broadcast add)
    for d in range(1, D):
        lin = lin + w[:, d:d + 1] * x[d:d + 1, :]

    o_ref[...] = (env_ref[...] * jnp.sin(lin)).astype(o_ref.dtype)


def _round_up(a, b):
    return ((a + b - 1) // b) * b


def _choose_tile_s(S, C, D, out_bytes):
    """Pick a lane-aligned spatial tile that (a) evenly divides round_up(S, 128) so no
    large padding pass is needed, (b) keeps per-step work well above the grid-step
    overhead, and (c) keeps the double-buffered VMEM footprint v7x-safe (<= ~36 MiB)."""
    s128 = _round_up(S, 128)
    n_units = s128 // 128
    # VMEM bytes per unit (128 lanes) of tile_s: two double-buffered coord inputs (f32),
    # double-buffered output tile, and the f32 envelope scratch.
    per_ts = 2 * 2 * D * 4 + 2 * C * out_bytes + C * 4
    budget = 36 * 1024 * 1024
    cap_units = max(1, budget // (per_ts * 128))
    # Target ~2 MiB of output per step, clamped to [1024, 32768] spatial elements.
    target = (2 * 1024 * 1024) // max(1, C * out_bytes)
    target_units = max(8, min(256, target // 128))
    want_units = max(1, min(n_units, cap_units, target_units))
    # Largest divisor of n_units that is <= want_units (guarantees even tiling).
    units = 1
    for d in range(want_units, 0, -1):
        if n_units % d == 0:
            units = d
            break
    return units * 128, s128


def anisotropic_gabor_forward(x, weight, bias, gammas, mis, *, out_dtype=None):
    """x: (B, D, H, W) NCHW; weight: (C, D, 1, ..., 1); bias: (C,);
    gammas/mis: length-D lists of (C, 1).  Returns (B, C, H, W)."""
    B, D, H, W = x.shape
    C = weight.shape[0]
    S = H * W
    out_dtype = x.dtype if out_dtype is None else jnp.dtype(out_dtype)
    out_bytes = jnp.dtype(out_dtype).itemsize

    tile_s, S_pad = _choose_tile_s(S, C, D, out_bytes)

    # NCHW-native flattened layout: spatial on the last (lane) axis. No transposes.
    x_flat = x.reshape(B, D, S)
    if S_pad != S:
        # tile_s divides S_pad, so this is at most 127 trailing elements of
        # lane-alignment padding (sliced off again below).
        x_flat = jnp.pad(x_flat, ((0, 0), (0, 0), (0, S_pad - S)))

    # Pack all tiny per-channel parameters into one resident (C, 3D+1) operand.
    # gamma and gamma*mi are pre-scaled by sqrt(0.5) so the kernel uses exp(quad)
    # directly (drops the -0.5*quad whole-tile multiply).
    sqrt_half = np.float32(np.sqrt(0.5))
    w2 = weight.reshape(C, D).astype(jnp.float32)
    g = jnp.concatenate([jnp.reshape(g_, (C, 1)) for g_ in gammas], axis=1).astype(jnp.float32)
    m = jnp.concatenate([jnp.reshape(m_, (C, 1)) for m_ in mis], axis=1).astype(jnp.float32)
    params = jnp.concatenate(
        [w2, bias.reshape(C, 1).astype(jnp.float32), sqrt_half * g, sqrt_half * g * m],
        axis=1)                                                      # (C, 3D+1)
    P = 3 * D + 1

    n_tiles = S_pad // tile_s
    grid = (n_tiles, B)   # batch innermost ("arbitrary") -> envelope cached per tile

    # Double-buffered VMEM footprint -> vmem limit hint (v7x has only 64 MiB physical).
    footprint = (2 * 2 * (D * tile_s * 4)          # coord + per-batch coord inputs
                 + 2 * (C * P * 4)                 # packed params
                 + 2 * (C * tile_s * out_bytes)    # output tile
                 + C * tile_s * 4)                 # envelope scratch
    vmem_limit = int(min(max(footprint + (8 << 20), 32 << 20), 48 << 20))

    cost = pl.CostEstimate(
        flops=int(B * C * S * (2 * D + 1) + C * S * 4 * D),
        transcendentals=int(B * C * S + C * S),
        bytes_accessed=int((B + 1) * D * S * 4 + C * P * 4 + B * C * S * out_bytes))

    out = pl.pallas_call(
        _gabor_kernel,
        out_shape=jax.ShapeDtypeStruct((B, C, S_pad), out_dtype),
        grid_spec=pltpu.PrefetchScalarGridSpec(
            num_scalar_prefetch=0,
            grid=grid,
            in_specs=[
                # Envelope coordinates: always batch element 0 (matches PyTorch x[0]).
                # Block index is constant over the inner batch axis -> no re-DMA per b.
                pl.BlockSpec((None, D, tile_s), lambda i, b: (0, 0, i)),
                # Per-batch coordinates for the 1x1-conv (linear) part.
                pl.BlockSpec((None, D, tile_s), lambda i, b: (b, 0, i)),
                # Packed params, constant across the grid.
                pl.BlockSpec((C, P), lambda i, b: (0, 0)),
            ],
            out_specs=pl.BlockSpec((None, C, tile_s), lambda i, b: (b, 0, i)),
            scratch_shapes=[pltpu.VMEM((C, tile_s), jnp.float32)],
        ),
        compiler_params=pltpu.CompilerParams(
            dimension_semantics=("parallel", "arbitrary"),
            vmem_limit_bytes=vmem_limit),
        cost_estimate=cost,
    )(x_flat, x_flat, params)

    if S_pad != S:
        out = out[:, :, :S]
    return out.reshape(B, C, H, W)


def ref_forward(x, weight, bias, gammas, mis):
    """Pure-JAX reference matching the PyTorch forward exactly (elementwise, no MXU)."""
    B, D, H, W = x.shape
    C = weight.shape[0]
    w = weight.reshape(C, D)
    env = jnp.ones((1, C, H, W), jnp.float32)
    lin = jnp.broadcast_to(bias.reshape(1, C, 1, 1), (B, C, H, W))
    for i in range(D):
        g = gammas[i].reshape(1, C, 1, 1)
        mi = mis[i].reshape(1, C, 1, 1)
        c = x[0, i][None, None]                      # (1, 1, H, W)
        env = env * jnp.exp(-0.5 * (g * (c - mi)) ** 2)
        lin = lin + x[:, i][:, None] * w[:, i].reshape(1, C, 1, 1)
    return env * jnp.sin(lin)


def init_params(key, data_dim, hidden_channels, current_layer,
                omega_0, alpha=6.0, beta=1.0):
    """Deterministic re-implementation of AnisotropicGaborLayer.__init__ parameter shapes."""
    keys = jax.random.split(key, 2 * data_dim + 1)
    gammas = [
        jax.random.gamma(keys[i], alpha / (current_layer + 1),
                         (hidden_channels, 1), dtype=jnp.float32) / beta
        for i in range(data_dim)
    ]
    mis = [
        jax.random.uniform(keys[data_dim + i], (hidden_channels, 1), dtype=jnp.float32)
        for i in range(data_dim)
    ]
    weight = jax.random.normal(keys[-1], (hidden_channels, data_dim) + (1,) * data_dim,
                               dtype=jnp.float32)
    weight = weight * (2.0 * np.pi * omega_0) * gammas[0].reshape(
        hidden_channels, 1, *(1,) * data_dim)
    bias = jnp.zeros((hidden_channels,), jnp.float32)
    return weight, bias, gammas, mis


if __name__ == "__main__":
    data_dim = 2
    hidden_channels = 32
    H = W = 16
    B = 2
    current_layer = 1
    # Module default omega_0 is 2976.49; a smaller value keeps f32 sin() arguments in a
    # range where kernel and reference agree to tight tolerances in this demo.
    omega_0 = 30.0

    key = jax.random.PRNGKey(0)
    kp, kx = jax.random.split(key)
    weight, bias, gammas, mis = init_params(kp, data_dim, hidden_channels,
                                            current_layer, omega_0)

    # Coordinate-grid style input (as MAGNets feed this layer), NCHW, with a small
    # per-batch perturbation to exercise the "envelope uses batch element 0" semantics.
    ys = jnp.linspace(-1.0, 1.0, H, dtype=jnp.float32)
    xs = jnp.linspace(-1.0, 1.0, W, dtype=jnp.float32)
    gy, gx = jnp.meshgrid(ys, xs, indexing="ij")
    base = jnp.stack([gy, gx], axis=0)[None]                      # (1, 2, H, W)
    noise = 0.05 * jax.random.normal(kx, (B, data_dim, H, W), dtype=jnp.float32)
    x = (jnp.broadcast_to(base, (B, data_dim, H, W)) + noise).astype(jnp.float32)

    out = jax.block_until_ready(anisotropic_gabor_forward(x, weight, bias, gammas, mis))
    ref = jax.block_until_ready(ref_forward(x, weight, bias, gammas, mis))

    assert out.shape == (B, hidden_channels, H, W), out.shape
    np.testing.assert_allclose(np.asarray(out), np.asarray(ref), rtol=1e-3, atol=5e-3)

    print("KERNEL_OK")
</pallas_src>

<mosaic_0001>
module attributes {stable_mosaic.version = 11 : i64} {
  func.func @_gabor_kernel(%arg0: i32, %arg1: i32, %arg2: memref<1x2x256xf32, #tpu.memory_space<vmem>>, %arg3: memref<1x2x256xf32, #tpu.memory_space<vmem>>, %arg4: memref<32x7xf32, #tpu.memory_space<vmem>>, %arg5: memref<1x32x256xf32, #tpu.memory_space<vmem>>, %arg6: memref<32x256xf32, #tpu.memory_space<vmem>>) attributes {dimension_semantics = [#tpu.dimension_semantics<parallel>, #tpu.dimension_semantics<arbitrary>], iteration_bounds = array<i64: 1, 2>, scalar_prefetch = 0 : i64, scratch_operands = 1 : i64, tpu.core_type = #tpu.core_type<tc>, window_params = [{transform_indices = @transform_0, window_bounds = array<i64: 1, 2, 256>}, {transform_indices = @transform_1, window_bounds = array<i64: 1, 2, 256>}, {pipeline_mode = #tpu.pipeline_mode<synchronous>, transform_indices = @transform_2, window_bounds = array<i64: 32, 7>}, {transform_indices = @transform_3, window_bounds = array<i64: 1, 32, 256>}]} {
    %c0 = arith.constant 0 : index
    %c0_0 = arith.constant 0 : index
    %0 = vector.load %arg4[%c0, %c0_0] : memref<32x7xf32, #tpu.memory_space<vmem>>, vector<32x7xf32>
    %1 = vector.extract_strided_slice %0 {offsets = [0, 0], sizes = [32, 2], strides = [1, 1]} : vector<32x7xf32> to vector<32x2xf32>
    %2 = vector.extract_strided_slice %0 {offsets = [0, 2], sizes = [32, 1], strides = [1, 1]} : vector<32x7xf32> to vector<32x1xf32>
    %3 = vector.extract_strided_slice %0 {offsets = [0, 3], sizes = [32, 2], strides = [1, 1]} : vector<32x7xf32> to vector<32x2xf32>
    %4 = vector.extract_strided_slice %0 {offsets = [0, 5], sizes = [32, 2], strides = [1, 1]} : vector<32x7xf32> to vector<32x2xf32>
    %c0_i32 = arith.constant 0 : i32
    %5 = arith.cmpi eq, %arg1, %c0_i32 : i32
    %6 = arith.extui %5 : i1 to i32
    %c0_i32_1 = arith.constant 0 : i32
    %7 = arith.cmpi ne, %6, %c0_i32_1 : i32
    scf.if %7 {
      %c0_10 = arith.constant 0 : index
      %c0_11 = arith.constant 0 : index
      %c0_12 = arith.constant 0 : index
      %29 = vector.load %arg2[%c0_10, %c0_11, %c0_12] : memref<1x2x256xf32, #tpu.memory_space<vmem>>, vector<1x2x256xf32>
      %30 = vector.shape_cast %29 : vector<1x2x256xf32> to vector<2x256xf32>
      %31 = vector.extract_strided_slice %3 {offsets = [0, 0], sizes = [32, 1], strides = [1, 1]} : vector<32x2xf32> to vector<32x1xf32>
      %32 = vector.extract_strided_slice %30 {offsets = [0, 0], sizes = [1, 256], strides = [1, 1]} : vector<2x256xf32> to vector<1x256xf32>
      %33 = vector.broadcast %31 : vector<32x1xf32> to vector<32x256xf32>
      %34 = vector.broadcast %32 : vector<1x256xf32> to vector<32x256xf32>
      %35 = arith.mulf %33, %34 : vector<32x256xf32>
      %36 = vector.extract_strided_slice %4 {offsets = [0, 0], sizes = [32, 1], strides = [1, 1]} : vector<32x2xf32> to vector<32x1xf32>
      %37 = vector.broadcast %36 : vector<32x1xf32> to vector<32x256xf32>
      %38 = arith.subf %35, %37 : vector<32x256xf32>
      %39 = arith.mulf %38, %38 : vector<32x256xf32>
      %cst = arith.constant 0.000000e+00 : f32
      %40 = vector.broadcast %cst : f32 to vector<32x256xf32>
      %41 = arith.subf %40, %39 : vector<32x256xf32>
      %42 = vector.extract_strided_slice %3 {offsets = [0, 1], sizes = [32, 1], strides = [1, 1]} : vector<32x2xf32> to vector<32x1xf32>
      %43 = vector.extract_strided_slice %30 {offsets = [1, 0], sizes = [1, 256], strides = [1, 1]} : vector<2x256xf32> to vector<1x256xf32>
      %44 = vector.broadcast %42 : vector<32x1xf32> to vector<32x256xf32>
      %45 = vector.broadcast %43 : vector<1x256xf32> to vector<32x256xf32>
      %46 = arith.mulf %44, %45 : vector<32x256xf32>
      %47 = vector.extract_strided_slice %4 {offsets = [0, 1], sizes = [32, 1], strides = [1, 1]} : vector<32x2xf32> to vector<32x1xf32>
      %48 = vector.broadcast %47 : vector<32x1xf32> to vector<32x256xf32>
      %49 = arith.subf %46, %48 : vector<32x256xf32>
      %50 = arith.mulf %49, %49 : vector<32x256xf32>
      %51 = arith.subf %41, %50 : vector<32x256xf32>
      %52 = math.exp %51 : vector<32x256xf32>
      %c0_13 = arith.constant 0 : index
      %c0_14 = arith.constant 0 : index
      %53 = vector.load %arg6[%c0_13, %c0_14] : memref<32x256xf32, #tpu.memory_space<vmem>>, vector<32x256xf32>
      tpu.vector_store %arg6[%c0_13, %c0_14], %52 {strides = array<i32>} : memref<32x256xf32, #tpu.memory_space<vmem>>, vector<32x256xf32>,
    } else {
    }
    %c0_2 = arith.constant 0 : index
    %c0_3 = arith.constant 0 : index
    %c0_4 = arith.constant 0 : index
    %8 = vector.load %arg3[%c0_2, %c0_3, %c0_4] : memref<1x2x256xf32, #tpu.memory_space<vmem>>, vector<1x2x256xf32>
    %9 = vector.shape_cast %8 : vector<1x2x256xf32> to vector<2x256xf32>
    %10 = vector.extract_strided_slice %1 {offsets = [0, 0], sizes = [32, 1], strides = [1, 1]} : vector<32x2xf32> to vector<32x1xf32>
    %11 = vector.extract_strided_slice %9 {offsets = [0, 0], sizes = [1, 256], strides = [1, 1]} : vector<2x256xf32> to vector<1x256xf32>
    %12 = vector.broadcast %10 : vector<32x1xf32> to vector<32x256xf32>
    %13 = vector.broadcast %11 : vector<1x256xf32> to vector<32x256xf32>
    %14 = arith.mulf %12, %13 : vector<32x256xf32>
    %15 = vector.broadcast %2 : vector<32x1xf32> to vector<32x256xf32>
    %16 = arith.addf %14, %15 : vector<32x256xf32>
    %17 = vector.extract_strided_slice %1 {offsets = [0, 1], sizes = [32, 1], strides = [1, 1]} : vector<32x2xf32> to vector<32x1xf32>
    %18 = vector.extract_strided_slice %9 {offsets = [1, 0], sizes = [1, 256], strides = [1, 1]} : vector<2x256xf32> to vector<1x256xf32>
    %19 = vector.broadcast %17 : vector<32x1xf32> to vector<32x256xf32>
    %20 = vector.broadcast %18 : vector<1x256xf32> to vector<32x256xf32>
    %21 = arith.mulf %19, %20 : vector<32x256xf32>
    %22 = arith.addf %16, %21 : vector<32x256xf32>
    %c0_5 = arith.constant 0 : index
    %c0_6 = arith.constant 0 : index
    %23 = vector.load %arg6[%c0_5, %c0_6] : memref<32x256xf32, #tpu.memory_space<vmem>>, vector<32x256xf32>
    %24 = math.sin %22 : vector<32x256xf32>
    %25 = arith.mulf %23, %24 : vector<32x256xf32>
    %c0_7 = arith.constant 0 : index
    %c0_8 = arith.constant 0 : index
    %c0_9 = arith.constant 0 : index
    %26 = vector.load %arg5[%c0_7, %c0_8, %c0_9] : memref<1x32x256xf32, #tpu.memory_space<vmem>>, vector<1x32x256xf32>
    %27 = vector.shape_cast %26 : vector<1x32x256xf32> to vector<32x256xf32>
    %28 = vector.shape_cast %25 : vector<32x256xf32> to vector<1x32x256xf32>
    tpu.vector_store %arg5[%c0_7, %c0_8, %c0_9], %28 {strides = array<i32>} : memref<1x32x256xf32, #tpu.memory_space<vmem>>, vector<1x32x256xf32>,
    return
  }
  func.func @transform_0(%arg0: i32, %arg1: i32) -> (i32, i32, i32) {
    %c0_i32 = arith.constant 0 : i32
    %c0_i32_0 = arith.constant 0 : i32
    %c0_i32_1 = arith.constant 0 : i32
    return %c0_i32, %c0_i32_0, %arg0 : i32, i32, i32
  }
  func.func @transform_1(%arg0: i32, %arg1: i32) -> (i32, i32, i32) {
    %c0_i32 = arith.constant 0 : i32
    %c0_i32_0 = arith.constant 0 : i32
    return %arg1, %c0_i32, %arg0 : i32, i32, i32
  }
  func.func @transform_2(%arg0: i32, %arg1: i32) -> (i32, i32) {
    %c0_i32 = arith.constant 0 : i32
    %c0_i32_0 = arith.constant 0 : i32
    %c0_i32_1 = arith.constant 0 : i32
    return %c0_i32, %c0_i32_0 : i32, i32
  }
  func.func @transform_3(%arg0: i32, %arg1: i32) -> (i32, i32, i32) {
    %c0_i32 = arith.constant 0 : i32
    %c0_i32_0 = arith.constant 0 : i32
    return %arg1, %c0_i32, %arg0 : i32, i32, i32
  }
}

</mosaic_0001>

<llo_original>
// kernel: tpu_custom_call.1
$region0: #{tpu_custom_call.1}
  #allocation0 [shape = 'u32[]', space=smem, size = 0x4, offset = 0x4, fixed_abs, tag = 'smem constant byte address 0x4 - core index']
  #allocation1 [shape = 'u32[144,128]{1,0:T(1,128)}', space=vmem, size = 0x12000, scoped, tag = 'internal scratch']
  #allocation2 [shape = 'f32[32,256]{1,0:T(8,128)}', space=vmem, size = 0x8000, scoped, tag = 'scratch operand']
  %s0 = inlined_call_operand.vmem [shape: f32[2,2,256], index: 0, kind: input, shape index: {}]
  %s1 = inlined_call_operand.vmem [shape: f32[2,2,256], index: 1, kind: input, shape index: {}]
  %s2 = inlined_call_operand.vmem [shape: f32[32,7], index: 2, kind: input, shape index: {}]
  %s3 = inlined_call_operand.hbm [shape: f32[2,32,256], index: 3, kind: output, shape index: {}]
  %s4 = sld [smem:[#allocation0]]
  $region49: #{tpu_custom_call.1} parent=0
    _
  %s6 = ssub.s32 1, %s4
  %s7 = scalar_select 0, %s6, %s4
  $region1: #{tpu_custom_call.1} parent=0
    #allocation3 [shape = 'u8[65536]{0}', space=vmem, size = 0x10000, scoped, tag = 'output window, operand 0']
    #allocation4 [shape = 's32[2]{0}', space=sflag, size = 0x8, scoped, tag = 'scoped memory for tpu_custom_call.1']
    %8 = vsyncpa [#allocation4], 0
    %s9 = scalar_lea.sflag [#allocation4], 1
    %10 = vsyncpa %s9, 0
    loop: start=0, step=1, limit=4
    $region2: #{tpu_custom_call.1} parent=1 // loop_pre_header
      _
    $region3: #{tpu_custom_call.1} parent=1 // loop_header
      %s12 = sphi 0, %s16
      %p13 = scmp.ge.s32.totalorder %s12, 4
      %s19 = sphi 0, %s31
      %s20 = sphi 0, %s27
      %s21 = sphi 0, %s19
      %s22 = sphi 0, %s20
      %s23 = sphi 0, %s21
      %s24 = sphi 0, %s22
      %s34 = sphi 0, %s36
      %s37 = sphi 0, %s34
      %s38 = sphi 0, %s37
      %s54 = sphi 0, %s38
      %s62 = sphi 0, %s64
      %s65 = sphi 0, %s62
      %s66 = sphi 0, %s65
      %s82 = sphi 0, %s66
      %s86 = sphi 0, %s86
      %s88 = sphi 0, %s86
      %s89 = sphi 0, %s88
      %s103 = sphi 0, %s89
      %s111 = sphi 0, %s113
      %s114 = sphi 0, %s111
      %s115 = sphi 0, %s114
      %s131 = sphi 0, %s115
    $region4: #{tpu_custom_call.1} parent=1 // loop_header_branch
      %15 = sbr.rel (%p13) target = $region8
    $region5: #{tpu_custom_call.1} parent=1 // loop_body
      %s17 = ssub.s32 %s12, 1
      %s18 = ssub.s32 %s12, 2
      %s25 = sadd.s32 1, %s20
      %p26 = scmp.ge.s32.totalorder %s25, 2
      %s27 = scalar_select %p26, 0, %s25
      %s28 = sadd.s32 1, %s19
      %s29 = scalar_select %p26, %s28, %s19
      %p30 = scmp.ge.s32.totalorder %s29, 1
      %s31 = scalar_select %p30, 0, %s29
      %s32 = ssub.s32 %s19, %s31
      %p33 = scmp.eq.s32.totalorder %s32, 0
      %s35 = sadd.s32 %s34, 1
      %s36 = scalar_select %p33, %s34, %s35
      %p39 = pneg %p33
      %p40 = scmp.eq.s32.totalorder %s12, 1
      %p41 = por %p39, %p40
      %p42 = scmp.ne.s32.totalorder %s34, %s37
      %p43 = scmp.eq.s32.totalorder %s12, 0
      %p44 = por %p42, %p43
      %p45 = scmp.ne.s32.totalorder %s34, %s37
      %p46 = scmp.eq.s32.totalorder %s17, 1
      %p47 = por %p45, %p46
      %p48 = scmp.ne.s32.totalorder %s37, %s38
      %p49 = scmp.eq.s32.totalorder %s17, 0
      %p50 = por %p48, %p49
      %p51 = scmp.ne.s32.totalorder %s37, %s38
      %p52 = scmp.eq.s32.totalorder %s18, 1
      %p53 = por %p51, %p52
      %p55 = scmp.ne.s32.totalorder %s38, %s54
      %p56 = scmp.eq.s32.totalorder %s18, 0
      %p57 = por %p55, %p56
      %s58 = ssub.s32 %s20, %s27
      %s59 = ssub.s32 %s19, %s31
      %s60 = sor.u32 %s58, %s59
      %p61 = scmp.eq.s32.totalorder %s60, 0
      %s63 = sadd.s32 %s62, 1
      %s64 = scalar_select %p61, %s62, %s63
      %p67 = pneg %p61
      %p68 = scmp.eq.s32.totalorder %s12, 1
      %p69 = por %p67, %p68
      %p70 = scmp.ne.s32.totalorder %s62, %s65
      %p71 = scmp.eq.s32.totalorder %s12, 0
      %p72 = por %p70, %p71
      %p73 = scmp.ne.s32.totalorder %s62, %s65
      %p74 = scmp.eq.s32.totalorder %s17, 1
      %p75 = por %p73, %p74
      %p76 = scmp.ne.s32.totalorder %s65, %s66
      %p77 = scmp.eq.s32.totalorder %s17, 0
      %p78 = por %p76, %p77
      %p79 = scmp.ne.s32.totalorder %s65, %s66
      %p80 = scmp.eq.s32.totalorder %s18, 1
      %p81 = por %p79, %p80
      %p83 = scmp.ne.s32.totalorder %s66, %s82
      %p84 = scmp.eq.s32.totalorder %s18, 0
      %p85 = por %p83, %p84
      %s87 = sadd.s32 %s86, 1
      %p90 = scmp.eq.s32.totalorder %s12, 1
      %p91 = scmp.ne.s32.totalorder %s86, %s88
      %p92 = scmp.eq.s32.totalorder %s12, 0
      %p93 = por %p91, %p92
      %p94 = scmp.ne.s32.totalorder %s86, %s88
      %p95 = scmp.eq.s32.totalorder %s17, 1
      %p96 = por %p94, %p95
      %p97 = scmp.ne.s32.totalorder %s88, %s89
      %p98 = scmp.eq.s32.totalorder %s17, 0
      %p99 = por %p97, %p98
      %p100 = scmp.ne.s32.totalorder %s88, %s89
      %p101 = scmp.eq.s32.totalorder %s18, 1
      %p102 = por %p100, %p101
      %p104 = scmp.ne.s32.totalorder %s89, %s103
      %p105 = scmp.eq.s32.totalorder %s18, 0
      %p106 = por %p104, %p105
      %s107 = ssub.s32 %s20, %s27
      %s108 = ssub.s32 %s19, %s31
      %s109 = sor.u32 %s107, %s108
      %p110 = scmp.eq.s32.totalorder %s109, 0
      %s112 = sadd.s32 %s111, 1
      %s113 = scalar_select %p110, %s111, %s112
      %p116 = pneg %p110
      %p117 = scmp.eq.s32.totalorder %s12, 1
      %p118 = por %p116, %p117
      %p119 = scmp.ne.s32.totalorder %s111, %s114
      %p120 = scmp.eq.s32.totalorder %s12, 0
      %p121 = por %p119, %p120
      %p122 = scmp.ne.s32.totalorder %s111, %s114
      %p123 = scmp.eq.s32.totalorder %s17, 1
      %p124 = por %p122, %p123
      %p125 = scmp.ne.s32.totalorder %s114, %s115
      %p126 = scmp.eq.s32.totalorder %s17, 0
      %p127 = por %p125, %p126
      %p128 = scmp.ne.s32.totalorder %s114, %s115
      %p129 = scmp.eq.s32.totalorder %s18, 1
      %p130 = por %p128, %p129
      %p132 = scmp.ne.s32.totalorder %s115, %s131
      %p133 = scmp.eq.s32.totalorder %s18, 0
      %p134 = por %p132, %p133
      %p135 = scmp.le.s32.totalorder 1, %s12
      %p136 = scmp.lt.s32.totalorder %s12, 3
      %p137 = pnand %p135, %p136
      %p138 = pneg %p137
      // Predicated region
      $region9: #{tpu_custom_call.1} parent=5 // pred_check
        _
      $region10: #{tpu_custom_call.1} parent=5 // pred_check_branch
        %140 = sbr.rel (%p137) target = $region12
      $region11: #{tpu_custom_call.1} parent=5 // pred_region
        %s141 = ssub.s32 %s12, 1
        // Predicated region
        $region13: #{tpu_custom_call.1} parent=11 // pred_check
          %p142 = pneg %p50
        $region14: #{tpu_custom_call.1} parent=11 // pred_check_branch
          %144 = sbr.rel (%p142) target = $region16
        $region15: #{tpu_custom_call.1} parent=11 // pred_region
          %s145 = smul.u32 2, %s21
          %p146 = scmp.lt.s32.totalorder %s145, 1
          %s147 = scalar_select %p146, %s145, 1
          %s148 = smul.addr %s147, 2
          %s149 = scalar_lea.vmem %s0, %s148
          %s150 = smul.u32 2, %s21
        $region16: #{tpu_custom_call.1} parent=11 // pred_fallthru
          _
        // Predicated region
        $region17: #{tpu_custom_call.1} parent=11 // pred_check
          %p151 = pneg %p99
        $region18: #{tpu_custom_call.1} parent=11 // pred_check_branch
          %153 = sbr.rel (%p151) target = $region20
        $region19: #{tpu_custom_call.1} parent=11 // pred_region
          _
        $region20: #{tpu_custom_call.1} parent=11 // pred_fallthru
          _
      $region12: #{tpu_custom_call.1} parent=5 // pred_fallthru
        _
      %p154 = scmp.lt.s32.totalorder %s12, 2
      // Predicated region
      $region21: #{tpu_custom_call.1} parent=5 // pred_check
        %p155 = pneg %p154
      $region22: #{tpu_custom_call.1} parent=5 // pred_check_branch
        %157 = sbr.rel (%p155) target = $region24
      $region23: #{tpu_custom_call.1} parent=5 // pred_region
        // Predicated region
        $region25: #{tpu_custom_call.1} parent=23 // pred_check
          %p158 = pneg %p72
        $region26: #{tpu_custom_call.1} parent=23 // pred_check_branch
          %160 = sbr.rel (%p158) target = $region28
        $region27: #{tpu_custom_call.1} parent=23 // pred_region
          %s161 = smul.u32 2, %s19
          %p162 = scmp.lt.s32.totalorder %s20, 1
          %s163 = scalar_select %p162, %s20, 1
          %p164 = scmp.lt.s32.totalorder %s161, 1
          %s165 = scalar_select %p164, %s161, 1
          %s166 = smul.addr %s163, 2
          %s167 = sadd.s32 %s165, %s166
          %s168 = smul.addr %s167, 2
          %s169 = scalar_lea.vmem %s1, %s168
          %s170 = smul.u32 2, %s19
        $region28: #{tpu_custom_call.1} parent=23 // pred_fallthru
          _
      $region24: #{tpu_custom_call.1} parent=5 // pred_fallthru
        _
      %p171 = scmp.le.s32.totalorder 1, %s12
      %p172 = scmp.lt.s32.totalorder %s12, 3
      %p173 = pnand %p171, %p172
      %p174 = pneg %p173
      // Predicated region
      $region29: #{tpu_custom_call.1} parent=5 // pred_check
        _
      $region30: #{tpu_custom_call.1} parent=5 // pred_check_branch
        %176 = sbr.rel (%p173) target = $region32
      $region31: #{tpu_custom_call.1} parent=5 // pred_region
        %s177 = ssub.s32 %s12, 1
        %s178 = smul.u32 2, %s21
        %p179 = scmp.lt.s32.totalorder %s178, 1
        %s180 = scalar_select %p179, %s178, 1
        %s181 = smul.addr %s180, 2
        %s182 = scalar_lea.vmem %s0, %s181
        %p183 = pneg %p50
        %p184 = pneg %p47
        %s185 = smul.u32 2, %s21
        %p186 = scmp.lt.s32.totalorder %s22, 1
        %s187 = scalar_select %p186, %s22, 1
        %p188 = scmp.lt.s32.totalorder %s185, 1
        %s189 = scalar_select %p188, %s185, 1
        %s190 = smul.addr %s187, 2
        %s191 = sadd.s32 %s189, %s190
        %s192 = smul.addr %s191, 2
        %s193 = scalar_lea.vmem %s1, %s192
        %p194 = pneg %p78
        %p195 = pneg %p75
        %p196 = pneg %p99
        %p197 = pneg %p96
        %p198 = pneg %p127
        %p199 = pneg %p124
        %s200 = sand.u32 %s114, 1
        %s201 = scalar_lea.sflag [#allocation4], %s200
        %s202 = sand.u32 %s114, 1
        %s203 = smul.addr %s202, 64
        %s204 = scalar_lea.vmem [#allocation3], %s203
        %s205 = smul.u32 2, %s21
        %p206 = scmp.lt.s32.totalorder %s205, 1
        %s207 = scalar_select %p206, %s205, 1
        %s208 = smul.addr %s207, 2
        %s209 = scalar_lea.vmem %s0, %s208
        %s210 = smul.u32 2, %s21
        %s211 = smul.u32 2, %s21
        %p212 = scmp.lt.s32.totalorder %s22, 1
        %s213 = scalar_select %p212, %s22, 1
        %p214 = scmp.lt.s32.totalorder %s211, 1
        %s215 = scalar_select %p214, %s211, 1
        %s216 = smul.addr %s213, 2
        %s217 = sadd.s32 %s215, %s216
        %s218 = smul.addr %s217, 2
        %s219 = scalar_lea.vmem %s1, %s218
        %s220 = smul.u32 2, %s21
        %s221 = smul.u32 2, %s21
        %v222 = vld [vmem:[%s2] sm:$0xff]
        %v223 = vld [vmem:[%s2 + $0x8] sm:$0xff]
        %v224 = vld [vmem:[%s2 + $0x10] sm:$0xff]
        %v225 = vld [vmem:[%s2 + $0x18] sm:$0xff]
        %p226 = scmp.eq.s32.totalorder %s22, 0
        // Predicated region
        $region33: #{tpu_custom_call.1} parent=31 // pred_check
          %p227 = pneg %p226
        $region34: #{tpu_custom_call.1} parent=31 // pred_check_branch
          %229 = sbr.rel (%p227) target = $region36
        $region35: #{tpu_custom_call.1} parent=31 // pred_region
          %v230 = vld [vmem:[%s209] sm:$0xf]
          %232 = vset.pattern.permute.xlu0 3
          %233 = vperm.xlu0 %232, %v222
          %v234 = vpop.permute.xlu0 %233
          %237 = vset.pattern.permute.xlu0 3
          %238 = vperm.xlu0 %237, %v223
          %v239 = vpop.permute.xlu0 %238
          %242 = vset.pattern.permute.xlu0 3
          %243 = vperm.xlu0 %242, %v224
          %v244 = vpop.permute.xlu0 %243
          %247 = vset.pattern.permute.xlu0 3
          %248 = vperm.xlu0 %247, %v225
          %v249 = vpop.permute.xlu0 %248
          %v252 = vlaneseq
          %v253 = vshrl.u32 %v252, 7
          %v254 = vsub.s32 0, %v253
          %v255 = vrot.slane %v230, %v254
          %v256 = vlaneseq
          %v257 = vshrl.u32 %v256, 7
          %v258 = vsub.s32 2, %v257
          %v259 = vrot.slane %v230, %v258
          %v262 = vlaneseq
          %v263 = vshrl.u32 %v262, 7
          %v264 = vsub.s32 0, %v263
          %v265 = vrot.slane %v255, %v264
          %v266 = vlaneseq
          %v267 = vshrl.u32 %v266, 7
          %v268 = vsub.s32 0, %v267
          %v269 = vrot.slane %v259, %v268
          %v270 = vmul.f32 %v234, %v265
          %v271 = vmul.f32 %v234, %v269
          %v272 = vmul.f32 %v239, %v265
          %v273 = vmul.f32 %v239, %v269
          %v274 = vmul.f32 %v244, %v265
          %v275 = vmul.f32 %v244, %v269
          %v276 = vmul.f32 %v249, %v265
          %v277 = vmul.f32 %v249, %v269
          %278 = vset.pattern.permute.xlu0 5
          %279 = vperm.xlu0 %278, %v222
          %v280 = vpop.permute.xlu0 %279
          %282 = vset.pattern.permute.xlu0 5
          %283 = vperm.xlu0 %282, %v223
          %v284 = vpop.permute.xlu0 %283
          %286 = vset.pattern.permute.xlu0 5
          %287 = vperm.xlu0 %286, %v224
          %v288 = vpop.permute.xlu0 %287
          %290 = vset.pattern.permute.xlu0 5
          %291 = vperm.xlu0 %290, %v225
          %v292 = vpop.permute.xlu0 %291
          %v294 = vsub.f32 %v270, %v280
          %v295 = vsub.f32 %v271, %v280
          %v296 = vsub.f32 %v272, %v284
          %v297 = vsub.f32 %v273, %v284
          %v298 = vsub.f32 %v274, %v288
          %v299 = vsub.f32 %v275, %v288
          %v300 = vsub.f32 %v276, %v292
          %v301 = vsub.f32 %v277, %v292
          %v302 = vmul.f32 %v294, %v294
          %v303 = vmul.f32 %v295, %v295
          %v304 = vmul.f32 %v296, %v296
          %v305 = vmul.f32 %v297, %v297
          %v306 = vmul.f32 %v298, %v298
          %v307 = vmul.f32 %v299, %v299
          %v308 = vmul.f32 %v300, %v300
          %v309 = vmul.f32 %v301, %v301
          %v310 = vsub.f32 0.0, %v302
          %v311 = vsub.f32 0.0, %v303
          %v312 = vsub.f32 0.0, %v304
          %v313 = vsub.f32 0.0, %v305
          %v314 = vsub.f32 0.0, %v306
          %v315 = vsub.f32 0.0, %v307
          %v316 = vsub.f32 0.0, %v308
          %v317 = vsub.f32 0.0, %v309
          %318 = vset.pattern.permute.xlu0 4
          %319 = vperm.xlu0 %318, %v222
          %v320 = vpop.permute.xlu0 %319
          %322 = vset.pattern.permute.xlu0 4
          %323 = vperm.xlu0 %322, %v223
          %v324 = vpop.permute.xlu0 %323
          %326 = vset.pattern.permute.xlu0 4
          %327 = vperm.xlu0 %326, %v224
          %v328 = vpop.permute.xlu0 %327
          %330 = vset.pattern.permute.xlu0 4
          %331 = vperm.xlu0 %330, %v225
          %v332 = vpop.permute.xlu0 %331
          %v334 = vlaneseq
          %v335 = vshrl.u32 %v334, 7
          %v336 = vsub.s32 1, %v335
          %v337 = vrot.slane %v230, %v336
          %v338 = vlaneseq
          %v339 = vshrl.u32 %v338, 7
          %v340 = vsub.s32 3, %v339
          %v341 = vrot.slane %v230, %v340
          %v344 = vlaneseq
          %v345 = vshrl.u32 %v344, 7
          %v346 = vsub.s32 1, %v345
          %v347 = vrot.slane %v337, %v346
          %v348 = vlaneseq
          %v349 = vshrl.u32 %v348, 7
          %v350 = vsub.s32 1, %v349
          %v351 = vrot.slane %v341, %v350
          %v352 = vmul.f32 %v320, %v347
          %v353 = vmul.f32 %v320, %v351
          %v354 = vmul.f32 %v324, %v347
          %v355 = vmul.f32 %v324, %v351
          %v356 = vmul.f32 %v328, %v347
          %v357 = vmul.f32 %v328, %v351
          %v358 = vmul.f32 %v332, %v347
          %v359 = vmul.f32 %v332, %v351
          %360 = vset.pattern.permute.xlu0 6
          %361 = vperm.xlu0 %360, %v222
          %v362 = vpop.permute.xlu0 %361
          %364 = vset.pattern.permute.xlu0 6
          %365 = vperm.xlu0 %364, %v223
          %v366 = vpop.permute.xlu0 %365
          %368 = vset.pattern.permute.xlu0 6
          %369 = vperm.xlu0 %368, %v224
          %v370 = vpop.permute.xlu0 %369
          %372 = vset.pattern.permute.xlu0 6
          %373 = vperm.xlu0 %372, %v225
          %v374 = vpop.permute.xlu0 %373
          %v376 = vsub.f32 %v352, %v362
          %v377 = vsub.f32 %v353, %v362
          %v378 = vsub.f32 %v354, %v366
          %v379 = vsub.f32 %v355, %v366
          %v380 = vsub.f32 %v356, %v370
          %v381 = vsub.f32 %v357, %v370
          %v382 = vsub.f32 %v358, %v374
          %v383 = vsub.f32 %v359, %v374
          %v384 = vmul.f32 %v376, %v376
          %v385 = vmul.f32 %v377, %v377
          %v386 = vmul.f32 %v378, %v378
          %v387 = vmul.f32 %v379, %v379
          %v388 = vmul.f32 %v380, %v380
          %v389 = vmul.f32 %v381, %v381
          %v390 = vmul.f32 %v382, %v382
          %v391 = vmul.f32 %v383, %v383
          %v392 = vsub.f32 %v310, %v384
          %v393 = vsub.f32 %v311, %v385
          %v394 = vsub.f32 %v312, %v386
          %v395 = vsub.f32 %v313, %v387
          %v396 = vsub.f32 %v314, %v388
          %v397 = vsub.f32 %v315, %v389
          %v398 = vsub.f32 %v316, %v390
          %v399 = vsub.f32 %v317, %v391
          %v400 = vmul.f32 %v392, 1.442695
          %v401 = vpow.pop %v400
          %v402 = vmul.f32 %v393, 1.442695
          %v403 = vpow.pop %v402
          %v404 = vmul.f32 %v394, 1.442695
          %v405 = vpow.pop %v404
          %v406 = vmul.f32 %v395, 1.442695
          %v407 = vpow.pop %v406
          %v408 = vmul.f32 %v396, 1.442695
          %v409 = vpow.pop %v408
          %v410 = vmul.f32 %v397, 1.442695
          %v411 = vpow.pop %v410
          %v412 = vmul.f32 %v398, 1.442695
          %v413 = vpow.pop %v412
          %v414 = vmul.f32 %v399, 1.442695
          %v415 = vpow.pop %v414
          %416 = vst [vmem:[#allocation2] sm:$0xff] %v401
          %417 = vst [vmem:[#allocation2 + $0x8] sm:$0xff] %v403
          %418 = vst [vmem:[#allocation2 + $0x10] sm:$0xff] %v405
          %419 = vst [vmem:[#allocation2 + $0x18] sm:$0xff] %v407
          %420 = vst [vmem:[#allocation2 + $0x20] sm:$0xff] %v409
          %421 = vst [vmem:[#allocation2 + $0x28] sm:$0xff] %v411
          %422 = vst [vmem:[#allocation2 + $0x30] sm:$0xff] %v413
          %423 = vst [vmem:[#allocation2 + $0x38] sm:$0xff] %v415
        $region36: #{tpu_custom_call.1} parent=31 // pred_fallthru
          _
        %v424 = vld [vmem:[%s219] sm:$0xf]
        %426 = vset.pattern.permute.xlu0 0
        %427 = vperm.xlu0 %426, %v222
        %v428 = vpop.permute.xlu0 %427
        %431 = vset.pattern.permute.xlu0 0
        %432 = vperm.xlu0 %431, %v223
        %v433 = vpop.permute.xlu0 %432
        %436 = vset.pattern.permute.xlu0 0
        %437 = vperm.xlu0 %436, %v224
        %v438 = vpop.permute.xlu0 %437
        %441 = vset.pattern.permute.xlu0 0
        %442 = vperm.xlu0 %441, %v225
        %v443 = vpop.permute.xlu0 %442
        %v446 = vlaneseq
        %v447 = vshrl.u32 %v446, 7
        %v448 = vsub.s32 0, %v447
        %v449 = vrot.slane %v424, %v448
        %v450 = vlaneseq
        %v451 = vshrl.u32 %v450, 7
        %v452 = vsub.s32 2, %v451
        %v453 = vrot.slane %v424, %v452
        %v456 = vlaneseq
        %v457 = vshrl.u32 %v456, 7
        %v458 = vsub.s32 0, %v457
        %v459 = vrot.slane %v449, %v458
        %v460 = vlaneseq
        %v461 = vshrl.u32 %v460, 7
        %v462 = vsub.s32 0, %v461
        %v463 = vrot.slane %v453, %v462
        %v464 = vmul.f32 %v428, %v459
        %v465 = vmul.f32 %v428, %v463
        %v466 = vmul.f32 %v433, %v459
        %v467 = vmul.f32 %v433, %v463
        %v468 = vmul.f32 %v438, %v459
        %v469 = vmul.f32 %v438, %v463
        %v470 = vmul.f32 %v443, %v459
        %v471 = vmul.f32 %v443, %v463
        %472 = vset.pattern.permute.xlu0 2
        %473 = vperm.xlu0 %472, %v222
        %v474 = vpop.permute.xlu0 %473
        %476 = vset.pattern.permute.xlu0 2
        %477 = vperm.xlu0 %476, %v223
        %v478 = vpop.permute.xlu0 %477
        %480 = vset.pattern.permute.xlu0 2
        %481 = vperm.xlu0 %480, %v224
        %v482 = vpop.permute.xlu0 %481
        %484 = vset.pattern.permute.xlu0 2
        %485 = vperm.xlu0 %484, %v225
        %v486 = vpop.permute.xlu0 %485
        %v488 = vadd.f32 %v464, %v474
        %v489 = vadd.f32 %v465, %v474
        %v490 = vadd.f32 %v466, %v478
        %v491 = vadd.f32 %v467, %v478
        %v492 = vadd.f32 %v468, %v482
        %v493 = vadd.f32 %v469, %v482
        %v494 = vadd.f32 %v470, %v486
        %v495 = vadd.f32 %v471, %v486
        %496 = vset.pattern.permute.xlu0 1
        %497 = vperm.xlu0 %496, %v222
        %v498 = vpop.permute.xlu0 %497
        %500 = vset.pattern.permute.xlu0 1
        %501 = vperm.xlu0 %500, %v223
        %v502 = vpop.permute.xlu0 %501
        %504 = vset.pattern.permute.xlu0 1
        %505 = vperm.xlu0 %504, %v224
        %v506 = vpop.permute.xlu0 %505
        %508 = vset.pattern.permute.xlu0 1
        %509 = vperm.xlu0 %508, %v225
        %v510 = vpop.permute.xlu0 %509
        %v512 = vlaneseq
        %v513 = vshrl.u32 %v512, 7
        %v514 = vsub.s32 1, %v513
        %v515 = vrot.slane %v424, %v514
        %v516 = vlaneseq
        %v517 = vshrl.u32 %v516, 7
        %v518 = vsub.s32 3, %v517
        %v519 = vrot.slane %v424, %v518
        %v522 = vlaneseq
        %v523 = vshrl.u32 %v522, 7
        %v524 = vsub.s32 1, %v523
        %v525 = vrot.slane %v515, %v524
        %v526 = vlaneseq
        %v527 = vshrl.u32 %v526, 7
        %v528 = vsub.s32 1, %v527
        %v529 = vrot.slane %v519, %v528
        %v530 = vmul.f32 %v498, %v525
        %v531 = vmul.f32 %v498, %v529
        %v532 = vmul.f32 %v502, %v525
        %v533 = vmul.f32 %v502, %v529
        %v534 = vmul.f32 %v506, %v525
        %v535 = vmul.f32 %v506, %v529
        %v536 = vmul.f32 %v510, %v525
        %v537 = vmul.f32 %v510, %v529
        %v538 = vadd.f32 %v488, %v530
        %v539 = vadd.f32 %v489, %v531
        %v540 = vadd.f32 %v490, %v532
        %v541 = vadd.f32 %v491, %v533
        %v542 = vadd.f32 %v492, %v534
        %v543 = vadd.f32 %v493, %v535
        %v544 = vadd.f32 %v494, %v536
        %v545 = vadd.f32 %v495, %v537
        %v546 = vld [vmem:[#allocation2] sm:$0xff]
        %v547 = vld [vmem:[#allocation2 + $0x8] sm:$0xff]
        %v548 = vld [vmem:[#allocation2 + $0x10] sm:$0xff]
        %v549 = vld [vmem:[#allocation2 + $0x18] sm:$0xff]
        %v550 = vld [vmem:[#allocation2 + $0x20] sm:$0xff]
        %v551 = vld [vmem:[#allocation2 + $0x28] sm:$0xff]
        %v552 = vld [vmem:[#allocation2 + $0x30] sm:$0xff]
        %v553 = vld [vmem:[#allocation2 + $0x38] sm:$0xff]
        %v554 = vand.u32 2147483647, %v538
        %vm555 = vcmp.le.f32.partialorder %v554, 0.7853982
        %vm556 = vcmp.lt.s32.totalorder %v538, 0
        %v557 = vand.u32 %v538, 2139095040
        %v558 = vshrl.u32 %v557, 23
        %v559 = vsub.s32 %v558, 127
        %v560 = vand.u32 2147483647, %v538
        %v561 = vand.u32 %v560, 8388607
        %v562 = vor.u32 %v561, 8388608
        %v563 = vsub.s32 0, %v562
        %v564 = vadd.s32 %v559, 1
        %vm565 = vcmp.gt.s32.totalorder %v564, 0
        %v566 = vsel %vm565, %v564, 0
        %v567 = vshrl.u32 %v566, 5
        %v568 = vand.u32 %v566, 31
        %v569 = vsub.s32 32, %v568
        %v570 = vshrl.u32 683565275, %v569
        %v571 = vshll.u32 683565275, %v568
        %v572 = vshrl.u32 2475754826, %v569
        %v573 = vor.u32 %v571, %v572
        %v574 = vshll.u32 2475754826, %v568
        %v575 = vshrl.u32 2131351028, %v569
        %v576 = vor.u32 %v574, %v575
        %v577 = vshll.u32 2131351028, %v568
        %v578 = vshrl.u32 2102212464, %v569
        %v579 = vor.u32 %v577, %v578
        %v580 = vshll.u32 2102212464, %v568
        %v581 = vshrl.u32 920167782, %v569
        %v582 = vor.u32 %v580, %v581
        %v583 = vshll.u32 920167782, %v568
        %v584 = vshrl.u32 1326507024, %v569
        %v585 = vor.u32 %v583, %v584
        %vm586 = vcmp.lt.s32.totalorder %v567, 1
        %vm587 = vcmp.lt.s32.totalorder %v567, 2
        %vm588 = vcmp.lt.s32.totalorder %v567, 3
        %vm589 = vcmp.lt.s32.totalorder %v567, 4
        %v590 = vsel %vm586, %v570, %v573
        %v591 = vsel %vm589, %v579, 2102212464
        %v592 = vsel %vm588, %v576, %v591
        %v593 = vsel %vm587, %v590, %v592
        %v594 = vsel %vm586, %v573, %v576
        %v595 = vsel %vm589, %v582, 920167782
        %v596 = vsel %vm588, %v579, %v595
        %v597 = vsel %vm587, %v594, %v596
        %v598 = vsel %vm586, %v576, %v579
        %v599 = vsel %vm589, %v585, 1326507024
        %v600 = vsel %vm588, %v582, %v599
        %v601 = vsel %vm587, %v598, %v600
        %v602 = vshll.u32 %v562, 8
        %v603 = vmul.u32.u64.compose %v602, %v601
        %v604 = vextract.low.u32 %v603
        %v605 = vextract.high.u32 %v603
        %v606 = vmul.u32.u64.compose %v602, %v597
        %v607 = vextract.low.u32 %v606
        %v608 = vextract.high.u32 %v606
        %v609 = vmul.u32 %v602, %v593
        %v610 = vadd.s32 %v605, %v607
        %vm611 = vc.u32 %v605, %v607
        %v612 = vadd.s32 %v608, 1
        %v613 = vsel %vm611, %v612, %v608
        %v614 = vadd.s32 %v609, %v613
        %v615 = vadd.s32 %v614, 536870912
        %v616 = vshrl.u32 %v615, 30
        %v617 = vshll.u32 %v616, 30
        %v618 = vsub.s32 %v614, %v617
        %vm619 = vcmp.lt.s32.totalorder %v618, 0
        %v620 = vsub.s32 0, %v618
        %v621 = vsel %vm619, %v620, %v618
        %v622 = vclz %v621
        %v623 = vsub.s32 %v622, 2
        %vm624 = vcmp.gt.s32.totalorder 0, %v623
        %v625 = vsel %vm624, 0, %v623
        %v626 = vsub.s32 32, %v625
        %v627 = vshll.u32 %v618, %v625
        %v628 = vshrl.u32 %v610, %v626
        %v629 = vor.u32 %v627, %v628
        %v630 = vsub.s32 4294967266, %v625
        %v631 = vadd.s32 %v630, 127
        %v632 = vshll.u32 %v631, 23
        %v633 = vor.u32 4788187, %v632
        %v634 = vand.u32 2147483647, %v633
        %v636 = vcvt.s32.f32 %v629
        %v637 = vmul.f32 %v636, %v634
        %v638 = vxor.u32 %v637, 2147483648
        %v639 = vsel %vm556, %v638, %v637
        %v640 = vsub.s32 4, %v616
        %v641 = vsel %vm556, %v640, %v616
        %v642 = vsel %vm555, %v538, %v639
        %v643 = vsel %vm555, 0, %v641
        %v644 = vcosq.f32.pop %v642
        %v645 = vsinq.f32.pop %v642
        %vm646 = vweird.f32 %v538
        %v647 = vadd.s32 %v643, 3
        %v648 = vand.u32 %v647, 3
        %vm649 = vcmp.lt.s32.totalorder %v648, 2
        %vm650 = vcmp.eq.s32.totalorder %v648, 0
        %v651 = vxor.u32 %v645, 2147483648
        %v652 = vsel %vm650, %v644, %v651
        %vm653 = vcmp.eq.s32.totalorder %v648, 2
        %v654 = vxor.u32 %v644, 2147483648
        %v655 = vsel %vm653, %v654, %v645
        %v656 = vsel %vm649, %v652, %v655
        %v657 = vsel %vm646, nan, %v656
        %v658 = vand.u32 2147483647, %v539
        %vm659 = vcmp.le.f32.partialorder %v658, 0.7853982
        %vm660 = vcmp.lt.s32.totalorder %v539, 0
        %v661 = vand.u32 %v539, 2139095040
        %v662 = vshrl.u32 %v661, 23
        %v663 = vsub.s32 %v662, 127
        %v664 = vand.u32 2147483647, %v539
        %v665 = vand.u32 %v664, 8388607
        %v666 = vor.u32 %v665, 8388608
        %v667 = vsub.s32 0, %v666
        %v668 = vadd.s32 %v663, 1
        %vm669 = vcmp.gt.s32.totalorder %v668, 0
        %v670 = vsel %vm669, %v668, 0
        %v671 = vshrl.u32 %v670, 5
        %v672 = vand.u32 %v670, 31
        %v673 = vsub.s32 32, %v672
        %v674 = vshrl.u32 683565275, %v673
        %v675 = vshll.u32 683565275, %v672
        %v676 = vshrl.u32 2475754826, %v673
        %v677 = vor.u32 %v675, %v676
        %v678 = vshll.u32 2475754826, %v672
        %v679 = vshrl.u32 2131351028, %v673
        %v680 = vor.u32 %v678, %v679
        %v681 = vshll.u32 2131351028, %v672
        %v682 = vshrl.u32 2102212464, %v673
        %v683 = vor.u32 %v681, %v682
        %v684 = vshll.u32 2102212464, %v672
        %v685 = vshrl.u32 920167782, %v673
        %v686 = vor.u32 %v684, %v685
        %v687 = vshll.u32 920167782, %v672
        %v688 = vshrl.u32 1326507024, %v673
        %v689 = vor.u32 %v687, %v688
        %vm690 = vcmp.lt.s32.totalorder %v671, 1
        %vm691 = vcmp.lt.s32.totalorder %v671, 2
        %vm692 = vcmp.lt.s32.totalorder %v671, 3
        %vm693 = vcmp.lt.s32.totalorder %v671, 4
        %v694 = vsel %vm690, %v674, %v677
        %v695 = vsel %vm693, %v683, 2102212464
        %v696 = vsel %vm692, %v680, %v695
        %v697 = vsel %vm691, %v694, %v696
        %v698 = vsel %vm690, %v677, %v680
        %v699 = vsel %vm693, %v686, 920167782
        %v700 = vsel %vm692, %v683, %v699
        %v701 = vsel %vm691, %v698, %v700
        %v702 = vsel %vm690, %v680, %v683
        %v703 = vsel %vm693, %v689, 1326507024
        %v704 = vsel %vm692, %v686, %v703
        %v705 = vsel %vm691, %v702, %v704
        %v706 = vshll.u32 %v666, 8
        %v707 = vmul.u32.u64.compose %v706, %v705
        %v708 = vextract.low.u32 %v707
        %v709 = vextract.high.u32 %v707
        %v710 = vmul.u32.u64.compose %v706, %v701
        %v711 = vextract.low.u32 %v710
        %v712 = vextract.high.u32 %v710
        %v713 = vmul.u32 %v706, %v697
        %v714 = vadd.s32 %v709, %v711
        %vm715 = vc.u32 %v709, %v711
        %v716 = vadd.s32 %v712, 1
        %v717 = vsel %vm715, %v716, %v712
        %v718 = vadd.s32 %v713, %v717
        %v719 = vadd.s32 %v718, 536870912
        %v720 = vshrl.u32 %v719, 30
        %v721 = vshll.u32 %v720, 30
        %v722 = vsub.s32 %v718, %v721
        %vm723 = vcmp.lt.s32.totalorder %v722, 0
        %v724 = vsub.s32 0, %v722
        %v725 = vsel %vm723, %v724, %v722
        %v726 = vclz %v725
        %v727 = vsub.s32 %v726, 2
        %vm728 = vcmp.gt.s32.totalorder 0, %v727
        %v729 = vsel %vm728, 0, %v727
        %v730 = vsub.s32 32, %v729
        %v731 = vshll.u32 %v722, %v729
        %v732 = vshrl.u32 %v714, %v730
        %v733 = vor.u32 %v731, %v732
        %v734 = vsub.s32 4294967266, %v729
        %v735 = vadd.s32 %v734, 127
        %v736 = vshll.u32 %v735, 23
        %v737 = vor.u32 4788187, %v736
        %v738 = vand.u32 2147483647, %v737
        %v740 = vcvt.s32.f32 %v733
        %v741 = vmul.f32 %v740, %v738
        %v742 = vxor.u32 %v741, 2147483648
        %v743 = vsel %vm660, %v742, %v741
        %v744 = vsub.s32 4, %v720
        %v745 = vsel %vm660, %v744, %v720
        %v746 = vsel %vm659, %v539, %v743
        %v747 = vsel %vm659, 0, %v745
        %v748 = vcosq.f32.pop %v746
        %v749 = vsinq.f32.pop %v746
        %vm750 = vweird.f32 %v539
        %v751 = vadd.s32 %v747, 3
        %v752 = vand.u32 %v751, 3
        %vm753 = vcmp.lt.s32.totalorder %v752, 2
        %vm754 = vcmp.eq.s32.totalorder %v752, 0
        %v755 = vxor.u32 %v749, 2147483648
        %v756 = vsel %vm754, %v748, %v755
        %vm757 = vcmp.eq.s32.totalorder %v752, 2
        %v758 = vxor.u32 %v748, 2147483648
        %v759 = vsel %vm757, %v758, %v749
        %v760 = vsel %vm753, %v756, %v759
        %v761 = vsel %vm750, nan, %v760
        %v762 = vand.u32 2147483647, %v540
        %vm763 = vcmp.le.f32.partialorder %v762, 0.7853982
        %vm764 = vcmp.lt.s32.totalorder %v540, 0
        %v765 = vand.u32 %v540, 2139095040
        %v766 = vshrl.u32 %v765, 23
        %v767 = vsub.s32 %v766, 127
        %v768 = vand.u32 2147483647, %v540
        %v769 = vand.u32 %v768, 8388607
        %v770 = vor.u32 %v769, 8388608
        %v771 = vsub.s32 0, %v770
        %v772 = vadd.s32 %v767, 1
        %vm773 = vcmp.gt.s32.totalorder %v772, 0
        %v774 = vsel %vm773, %v772, 0
        %v775 = vshrl.u32 %v774, 5
        %v776 = vand.u32 %v774, 31
        %v777 = vsub.s32 32, %v776
        %v778 = vshrl.u32 683565275, %v777
        %v779 = vshll.u32 683565275, %v776
        %v780 = vshrl.u32 2475754826, %v777
        %v781 = vor.u32 %v779, %v780
        %v782 = vshll.u32 2475754826, %v776
        %v783 = vshrl.u32 2131351028, %v777
        %v784 = vor.u32 %v782, %v783
        %v785 = vshll.u32 2131351028, %v776
        %v786 = vshrl.u32 2102212464, %v777
        %v787 = vor.u32 %v785, %v786
        %v788 = vshll.u32 2102212464, %v776
        %v789 = vshrl.u32 920167782, %v777
        %v790 = vor.u32 %v788, %v789
        %v791 = vshll.u32 920167782, %v776
        %v792 = vshrl.u32 1326507024, %v777
        %v793 = vor.u32 %v791, %v792
        %vm794 = vcmp.lt.s32.totalorder %v775, 1
        %vm795 = vcmp.lt.s32.totalorder %v775, 2
        %vm796 = vcmp.lt.s32.totalorder %v775, 3
        %vm797 = vcmp.lt.s32.totalorder %v775, 4
        %v798 = vsel %vm794, %v778, %v781
        %v799 = vsel %vm797, %v787, 2102212464
        %v800 = vsel %vm796, %v784, %v799
        %v801 = vsel %vm795, %v798, %v800
        %v802 = vsel %vm794, %v781, %v784
        %v803 = vsel %vm797, %v790, 920167782
        %v804 = vsel %vm796, %v787, %v803
        %v805 = vsel %vm795, %v802, %v804
        %v806 = vsel %vm794, %v784, %v787
        %v807 = vsel %vm797, %v793, 1326507024
        %v808 = vsel %vm796, %v790, %v807
        %v809 = vsel %vm795, %v806, %v808
        %v810 = vshll.u32 %v770, 8
        %v811 = vmul.u32.u64.compose %v810, %v809
        %v812 = vextract.low.u32 %v811
        %v813 = vextract.high.u32 %v811
        %v814 = vmul.u32.u64.compose %v810, %v805
        %v815 = vextract.low.u32 %v814
        %v816 = vextract.high.u32 %v814
        %v817 = vmul.u32 %v810, %v801
        %v818 = vadd.s32 %v813, %v815
        %vm819 = vc.u32 %v813, %v815
        %v820 = vadd.s32 %v816, 1
        %v821 = vsel %vm819, %v820, %v816
        %v822 = vadd.s32 %v817, %v821
        %v823 = vadd.s32 %v822, 536870912
        %v824 = vshrl.u32 %v823, 30
        %v825 = vshll.u32 %v824, 30
        %v826 = vsub.s32 %v822, %v825
        %vm827 = vcmp.lt.s32.totalorder %v826, 0
        %v828 = vsub.s32 0, %v826
        %v829 = vsel %vm827, %v828, %v826
        %v830 = vclz %v829
        %v831 = vsub.s32 %v830, 2
        %vm832 = vcmp.gt.s32.totalorder 0, %v831
        %v833 = vsel %vm832, 0, %v831
        %v834 = vsub.s32 32, %v833
        %v835 = vshll.u32 %v826, %v833
        %v836 = vshrl.u32 %v818, %v834
        %v837 = vor.u32 %v835, %v836
        %v838 = vsub.s32 4294967266, %v833
        %v839 = vadd.s32 %v838, 127
        %v840 = vshll.u32 %v839, 23
        %v841 = vor.u32 4788187, %v840
        %v842 = vand.u32 2147483647, %v841
        %v844 = vcvt.s32.f32 %v837
        %v845 = vmul.f32 %v844, %v842
        %v846 = vxor.u32 %v845, 2147483648
        %v847 = vsel %vm764, %v846, %v845
        %v848 = vsub.s32 4, %v824
        %v849 = vsel %vm764, %v848, %v824
        %v850 = vsel %vm763, %v540, %v847
        %v851 = vsel %vm763, 0, %v849
        %v852 = vcosq.f32.pop %v850
        %v853 = vsinq.f32.pop %v850
        %vm854 = vweird.f32 %v540
        %v855 = vadd.s32 %v851, 3
        %v856 = vand.u32 %v855, 3
        %vm857 = vcmp.lt.s32.totalorder %v856, 2
        %vm858 = vcmp.eq.s32.totalorder %v856, 0
        %v859 = vxor.u32 %v853, 2147483648
        %v860 = vsel %vm858, %v852, %v859
        %vm861 = vcmp.eq.s32.totalorder %v856, 2
        %v862 = vxor.u32 %v852, 2147483648
        %v863 = vsel %vm861, %v862, %v853
        %v864 = vsel %vm857, %v860, %v863
        %v865 = vsel %vm854, nan, %v864
        %v866 = vand.u32 2147483647, %v541
        %vm867 = vcmp.le.f32.partialorder %v866, 0.7853982
        %vm868 = vcmp.lt.s32.totalorder %v541, 0
        %v869 = vand.u32 %v541, 2139095040
        %v870 = vshrl.u32 %v869, 23
        %v871 = vsub.s32 %v870, 127
        %v872 = vand.u32 2147483647, %v541
        %v873 = vand.u32 %v872, 8388607
        %v874 = vor.u32 %v873, 8388608
        %v875 = vsub.s32 0, %v874
        %v876 = vadd.s32 %v871, 1
        %vm877 = vcmp.gt.s32.totalorder %v876, 0
        %v878 = vsel %vm877, %v876, 0
        %v879 = vshrl.u32 %v878, 5
        %v880 = vand.u32 %v878, 31
        %v881 = vsub.s32 32, %v880
        %v882 = vshrl.u32 683565275, %v881
        %v883 = vshll.u32 683565275, %v880
        %v884 = vshrl.u32 2475754826, %v881
        %v885 = vor.u32 %v883, %v884
        %v886 = vshll.u32 2475754826, %v880
        %v887 = vshrl.u32 2131351028, %v881
        %v888 = vor.u32 %v886, %v887
        %v889 = vshll.u32 2131351028, %v880
        %v890 = vshrl.u32 2102212464, %v881
        %v891 = vor.u32 %v889, %v890
        %v892 = vshll.u32 2102212464, %v880
        %v893 = vshrl.u32 920167782, %v881
        %v894 = vor.u32 %v892, %v893
        %v895 = vshll.u32 920167782, %v880
        %v896 = vshrl.u32 1326507024, %v881
        %v897 = vor.u32 %v895, %v896
        %vm898 = vcmp.lt.s32.totalorder %v879, 1
        %vm899 = vcmp.lt.s32.totalorder %v879, 2
        %vm900 = vcmp.lt.s32.totalorder %v879, 3
        %vm901 = vcmp.lt.s32.totalorder %v879, 4
        %v902 = vsel %vm898, %v882, %v885
        %v903 = vsel %vm901, %v891, 2102212464
        %v904 = vsel %vm900, %v888, %v903
        %v905 = vsel %vm899, %v902, %v904
        %v906 = vsel %vm898, %v885, %v888
        %v907 = vsel %vm901, %v894, 920167782
        %v908 = vsel %vm900, %v891, %v907
        %v909 = vsel %vm899, %v906, %v908
        %v910 = vsel %vm898, %v888, %v891
        %v911 = vsel %vm901, %v897, 1326507024
        %v912 = vsel %vm900, %v894, %v911
        %v913 = vsel %vm899, %v910, %v912
        %v914 = vshll.u32 %v874, 8
        %v915 = vmul.u32.u64.compose %v914, %v913
        %v916 = vextract.low.u32 %v915
        %v917 = vextract.high.u32 %v915
        %v918 = vmul.u32.u64.compose %v914, %v909
        %v919 = vextract.low.u32 %v918
        %v920 = vextract.high.u32 %v918
        %v921 = vmul.u32 %v914, %v905
        %v922 = vadd.s32 %v917, %v919
        %vm923 = vc.u32 %v917, %v919
        %v924 = vadd.s32 %v920, 1
        %v925 = vsel %vm923, %v924, %v920
        %v926 = vadd.s32 %v921, %v925
        %v927 = vadd.s32 %v926, 536870912
        %v928 = vshrl.u32 %v927, 30
        %v929 = vshll.u32 %v928, 30
        %v930 = vsub.s32 %v926, %v929
        %vm931 = vcmp.lt.s32.totalorder %v930, 0
        %v932 = vsub.s32 0, %v930
        %v933 = vsel %vm931, %v932, %v930
        %v934 = vclz %v933
        %v935 = vsub.s32 %v934, 2
        %vm936 = vcmp.gt.s32.totalorder 0, %v935
        %v937 = vsel %vm936, 0, %v935
        %v938 = vsub.s32 32, %v937
        %v939 = vshll.u32 %v930, %v937
        %v940 = vshrl.u32 %v922, %v938
        %v941 = vor.u32 %v939, %v940
        %v942 = vsub.s32 4294967266, %v937
        %v943 = vadd.s32 %v942, 127
        %v944 = vshll.u32 %v943, 23
        %v945 = vor.u32 4788187, %v944
        %v946 = vand.u32 2147483647, %v945
        %v948 = vcvt.s32.f32 %v941
        %v949 = vmul.f32 %v948, %v946
        %v950 = vxor.u32 %v949, 2147483648
        %v951 = vsel %vm868, %v950, %v949
        %v952 = vsub.s32 4, %v928
        %v953 = vsel %vm868, %v952, %v928
        %v954 = vsel %vm867, %v541, %v951
        %v955 = vsel %vm867, 0, %v953
        %v956 = vcosq.f32.pop %v954
        %v957 = vsinq.f32.pop %v954
        %vm958 = vweird.f32 %v541
        %v959 = vadd.s32 %v955, 3
        %v960 = vand.u32 %v959, 3
        %vm961 = vcmp.lt.s32.totalorder %v960, 2
        %vm962 = vcmp.eq.s32.totalorder %v960, 0
        %v963 = vxor.u32 %v957, 2147483648
        %v964 = vsel %vm962, %v956, %v963
        %vm965 = vcmp.eq.s32.totalorder %v960, 2
        %v966 = vxor.u32 %v956, 2147483648
        %v967 = vsel %vm965, %v966, %v957
        %v968 = vsel %vm961, %v964, %v967
        %v969 = vsel %vm958, nan, %v968
        %v970 = vand.u32 2147483647, %v542
        %vm971 = vcmp.le.f32.partialorder %v970, 0.7853982
        %vm972 = vcmp.lt.s32.totalorder %v542, 0
        %v973 = vand.u32 %v542, 2139095040
        %v974 = vshrl.u32 %v973, 23
        %v975 = vsub.s32 %v974, 127
        %v976 = vand.u32 2147483647, %v542
        %v977 = vand.u32 %v976, 8388607
        %v978 = vor.u32 %v977, 8388608
        %v979 = vsub.s32 0, %v978
        %v980 = vadd.s32 %v975, 1
        %vm981 = vcmp.gt.s32.totalorder %v980, 0
        %v982 = vsel %vm981, %v980, 0
        %v983 = vshrl.u32 %v982, 5
        %v984 = vand.u32 %v982, 31
        %v985 = vsub.s32 32, %v984
        %v986 = vshrl.u32 683565275, %v985
        %v987 = vshll.u32 683565275, %v984
        %v988 = vshrl.u32 2475754826, %v985
        %v989 = vor.u32 %v987, %v988
        %v990 = vshll.u32 2475754826, %v984
        %v991 = vshrl.u32 2131351028, %v985
        %v992 = vor.u32 %v990, %v991
        %v993 = vshll.u32 2131351028, %v984
        %v994 = vshrl.u32 2102212464, %v985
        %v995 = vor.u32 %v993, %v994
        %v996 = vshll.u32 2102212464, %v984
        %v997 = vshrl.u32 920167782, %v985
        %v998 = vor.u32 %v996, %v997
        %v999 = vshll.u32 920167782, %v984
        %v1000 = vshrl.u32 1326507024, %v985
        %v1001 = vor.u32 %v999, %v1000
        %vm1002 = vcmp.lt.s32.totalorder %v983, 1
        %vm1003 = vcmp.lt.s32.totalorder %v983, 2
        %vm1004 = vcmp.lt.s32.totalorder %v983, 3
        %vm1005 = vcmp.lt.s32.totalorder %v983, 4
        %v1006 = vsel %vm1002, %v986, %v989
        %v1007 = vsel %vm1005, %v995, 2102212464
        %v1008 = vsel %vm1004, %v992, %v1007
        %v1009 = vsel %vm1003, %v1006, %v1008
        %v1010 = vsel %vm1002, %v989, %v992
        %v1011 = vsel %vm1005, %v998, 920167782
        %v1012 = vsel %vm1004, %v995, %v1011
        %v1013 = vsel %vm1003, %v1010, %v1012
        %v1014 = vsel %vm1002, %v992, %v995
        %v1015 = vsel %vm1005, %v1001, 1326507024
        %v1016 = vsel %vm1004, %v998, %v1015
        %v1017 = vsel %vm1003, %v1014, %v1016
        %v1018 = vshll.u32 %v978, 8
        %v1019 = vmul.u32.u64.compose %v1018, %v1017
        %v1020 = vextract.low.u32 %v1019
        %v1021 = vextract.high.u32 %v1019
        %v1022 = vmul.u32.u64.compose %v1018, %v1013
        %v1023 = vextract.low.u32 %v1022
        %v1024 = vextract.high.u32 %v1022
        %v1025 = vmul.u32 %v1018, %v1009
        %v1026 = vadd.s32 %v1021, %v1023
        %vm1027 = vc.u32 %v1021, %v1023
        %v1028 = vadd.s32 %v1024, 1
        %v1029 = vsel %vm1027, %v1028, %v1024
        %v1030 = vadd.s32 %v1025, %v1029
        %v1031 = vadd.s32 %v1030, 536870912
        %v1032 = vshrl.u32 %v1031, 30
        %v1033 = vshll.u32 %v1032, 30
        %v1034 = vsub.s32 %v1030, %v1033
        %vm1035 = vcmp.lt.s32.totalorder %v1034, 0
        %v1036 = vsub.s32 0, %v1034
        %v1037 = vsel %vm1035, %v1036, %v1034
        %v1038 = vclz %v1037
        %v1039 = vsub.s32 %v1038, 2
        %vm1040 = vcmp.gt.s32.totalorder 0, %v1039
        %v1041 = vsel %vm1040, 0, %v1039
        %v1042 = vsub.s32 32, %v1041
        %v1043 = vshll.u32 %v1034, %v1041
        %v1044 = vshrl.u32 %v1026, %v1042
        %v1045 = vor.u32 %v1043, %v1044
        %v1046 = vsub.s32 4294967266, %v1041
        %v1047 = vadd.s32 %v1046, 127
        %v1048 = vshll.u32 %v1047, 23
        %v1049 = vor.u32 4788187, %v1048
        %v1050 = vand.u32 2147483647, %v1049
        %v1052 = vcvt.s32.f32 %v1045
        %v1053 = vmul.f32 %v1052, %v1050
        %v1054 = vxor.u32 %v1053, 2147483648
        %v1055 = vsel %vm972, %v1054, %v1053
        %v1056 = vsub.s32 4, %v1032
        %v1057 = vsel %vm972, %v1056, %v1032
        %v1058 = vsel %vm971, %v542, %v1055
        %v1059 = vsel %vm971, 0, %v1057
        %v1060 = vcosq.f32.pop %v1058
        %v1061 = vsinq.f32.pop %v1058
        %vm1062 = vweird.f32 %v542
        %v1063 = vadd.s32 %v1059, 3
        %v1064 = vand.u32 %v1063, 3
        %vm1065 = vcmp.lt.s32.totalorder %v1064, 2
        %vm1066 = vcmp.eq.s32.totalorder %v1064, 0
        %v1067 = vxor.u32 %v1061, 2147483648
        %v1068 = vsel %vm1066, %v1060, %v1067
        %vm1069 = vcmp.eq.s32.totalorder %v1064, 2
        %v1070 = vxor.u32 %v1060, 2147483648
        %v1071 = vsel %vm1069, %v1070, %v1061
        %v1072 = vsel %vm1065, %v1068, %v1071
        %v1073 = vsel %vm1062, nan, %v1072
        %v1074 = vand.u32 2147483647, %v543
        %vm1075 = vcmp.le.f32.partialorder %v1074, 0.7853982
        %vm1076 = vcmp.lt.s32.totalorder %v543, 0
        %v1077 = vand.u32 %v543, 2139095040
        %v1078 = vshrl.u32 %v1077, 23
        %v1079 = vsub.s32 %v1078, 127
        %v1080 = vand.u32 2147483647, %v543
        %v1081 = vand.u32 %v1080, 8388607
        %v1082 = vor.u32 %v1081, 8388608
        %v1083 = vsub.s32 0, %v1082
        %v1084 = vadd.s32 %v1079, 1
        %vm1085 = vcmp.gt.s32.totalorder %v1084, 0
        %v1086 = vsel %vm1085, %v1084, 0
        %v1087 = vshrl.u32 %v1086, 5
        %v1088 = vand.u32 %v1086, 31
        %v1089 = vsub.s32 32, %v1088
        %v1090 = vshrl.u32 683565275, %v1089
        %v1091 = vshll.u32 683565275, %v1088
        %v1092 = vshrl.u32 2475754826, %v1089
        %v1093 = vor.u32 %v1091, %v1092
        %v1094 = vshll.u32 2475754826, %v1088
        %v1095 = vshrl.u32 2131351028, %v1089
        %v1096 = vor.u32 %v1094, %v1095
        %v1097 = vshll.u32 2131351028, %v1088
        %v1098 = vshrl.u32 2102212464, %v1089
        %v1099 = vor.u32 %v1097, %v1098
        %v1100 = vshll.u32 2102212464, %v1088
        %v1101 = vshrl.u32 920167782, %v1089
        %v1102 = vor.u32 %v1100, %v1101
        %v1103 = vshll.u32 920167782, %v1088
        %v1104 = vshrl.u32 1326507024, %v1089
        %v1105 = vor.u32 %v1103, %v1104
        %vm1106 = vcmp.lt.s32.totalorder %v1087, 1
        %vm1107 = vcmp.lt.s32.totalorder %v1087, 2
        %vm1108 = vcmp.lt.s32.totalorder %v1087, 3
        %vm1109 = vcmp.lt.s32.totalorder %v1087, 4
        %v1110 = vsel %vm1106, %v1090, %v1093
        %v1111 = vsel %vm1109, %v1099, 2102212464
        %v1112 = vsel %vm1108, %v1096, %v1111
        %v1113 = vsel %vm1107, %v1110, %v1112
        %v1114 = vsel %vm1106, %v1093, %v1096
        %v1115 = vsel %vm1109, %v1102, 920167782
        %v1116 = vsel %vm1108, %v1099, %v1115
        %v1117 = vsel %vm1107, %v1114, %v1116
        %v1118 = vsel %vm1106, %v1096, %v1099
        %v1119 = vsel %vm1109, %v1105, 1326507024
        %v1120 = vsel %vm1108, %v1102, %v1119
        %v1121 = vsel %vm1107, %v1118, %v1120
        %v1122 = vshll.u32 %v1082, 8
        %v1123 = vmul.u32.u64.compose %v1122, %v1121
        %v1124 = vextract.low.u32 %v1123
        %v1125 = vextract.high.u32 %v1123
        %v1126 = vmul.u32.u64.compose %v1122, %v1117
        %v1127 = vextract.low.u32 %v1126
        %v1128 = vextract.high.u32 %v1126
        %v1129 = vmul.u32 %v1122, %v1113
        %v1130 = vadd.s32 %v1125, %v1127
        %vm1131 = vc.u32 %v1125, %v1127
        %v1132 = vadd.s32 %v1128, 1
        %v1133 = vsel %vm1131, %v1132, %v1128
        %v1134 = vadd.s32 %v1129, %v1133
        %v1135 = vadd.s32 %v1134, 536870912
        %v1136 = vshrl.u32 %v1135, 30
        %v1137 = vshll.u32 %v1136, 30
        %v1138 = vsub.s32 %v1134, %v1137
        %vm1139 = vcmp.lt.s32.totalorder %v1138, 0
        %v1140 = vsub.s32 0, %v1138
        %v1141 = vsel %vm1139, %v1140, %v1138
        %v1142 = vclz %v1141
        %v1143 = vsub.s32 %v1142, 2
        %vm1144 = vcmp.gt.s32.totalorder 0, %v1143
        %v1145 = vsel %vm1144, 0, %v1143
        %v1146 = vsub.s32 32, %v1145
        %v1147 = vshll.u32 %v1138, %v1145
        %v1148 = vshrl.u32 %v1130, %v1146
        %v1149 = vor.u32 %v1147, %v1148
        %v1150 = vsub.s32 4294967266, %v1145
        %v1151 = vadd.s32 %v1150, 127
        %v1152 = vshll.u32 %v1151, 23
        %v1153 = vor.u32 4788187, %v1152
        %v1154 = vand.u32 2147483647, %v1153
        %v1156 = vcvt.s32.f32 %v1149
        %v1157 = vmul.f32 %v1156, %v1154
        %v1158 = vxor.u32 %v1157, 2147483648
        %v1159 = vsel %vm1076, %v1158, %v1157
        %v1160 = vsub.s32 4, %v1136
        %v1161 = vsel %vm1076, %v1160, %v1136
        %v1162 = vsel %vm1075, %v543, %v1159
        %v1163 = vsel %vm1075, 0, %v1161
        %v1164 = vcosq.f32.pop %v1162
        %v1165 = vsinq.f32.pop %v1162
        %vm1166 = vweird.f32 %v543
        %v1167 = vadd.s32 %v1163, 3
        %v1168 = vand.u32 %v1167, 3
        %vm1169 = vcmp.lt.s32.totalorder %v1168, 2
        %vm1170 = vcmp.eq.s32.totalorder %v1168, 0
        %v1171 = vxor.u32 %v1165, 2147483648
        %v1172 = vsel %vm1170, %v1164, %v1171
        %vm1173 = vcmp.eq.s32.totalorder %v1168, 2
        %v1174 = vxor.u32 %v1164, 2147483648
        %v1175 = vsel %vm1173, %v1174, %v1165
        %v1176 = vsel %vm1169, %v1172, %v1175
        %v1177 = vsel %vm1166, nan, %v1176
        %v1178 = vand.u32 2147483647, %v544
        %vm1179 = vcmp.le.f32.partialorder %v1178, 0.7853982
        %vm1180 = vcmp.lt.s32.totalorder %v544, 0
        %v1181 = vand.u32 %v544, 2139095040
        %v1182 = vshrl.u32 %v1181, 23
        %v1183 = vsub.s32 %v1182, 127
        %v1184 = vand.u32 2147483647, %v544
        %v1185 = vand.u32 %v1184, 8388607
        %v1186 = vor.u32 %v1185, 8388608
        %v1187 = vsub.s32 0, %v1186
        %v1188 = vadd.s32 %v1183, 1
        %vm1189 = vcmp.gt.s32.totalorder %v1188, 0
        %v1190 = vsel %vm1189, %v1188, 0
        %v1191 = vshrl.u32 %v1190, 5
        %v1192 = vand.u32 %v1190, 31
        %v1193 = vsub.s32 32, %v1192
        %v1194 = vshrl.u32 683565275, %v1193
        %v1195 = vshll.u32 683565275, %v1192
        %v1196 = vshrl.u32 2475754826, %v1193
        %v1197 = vor.u32 %v1195, %v1196
        %v1198 = vshll.u32 2475754826, %v1192
        %v1199 = vshrl.u32 2131351028, %v1193
        %v1200 = vor.u32 %v1198, %v1199
        %v1201 = vshll.u32 2131351028, %v1192
        %v1202 = vshrl.u32 2102212464, %v1193
        %v1203 = vor.u32 %v1201, %v1202
        %v1204 = vshll.u32 2102212464, %v1192
        %v1205 = vshrl.u32 920167782, %v1193
        %v1206 = vor.u32 %v1204, %v1205
        %v1207 = vshll.u32 920167782, %v1192
        %v1208 = vshrl.u32 1326507024, %v1193
        %v1209 = vor.u32 %v1207, %v1208
        %vm1210 = vcmp.lt.s32.totalorder %v1191, 1
        %vm1211 = vcmp.lt.s32.totalorder %v1191, 2
        %vm1212 = vcmp.lt.s32.totalorder %v1191, 3
        %vm1213 = vcmp.lt.s32.totalorder %v1191, 4
        %v1214 = vsel %vm1210, %v1194, %v1197
        %v1215 = vsel %vm1213, %v1203, 2102212464
        %v1216 = vsel %vm1212, %v1200, %v1215
        %v1217 = vsel %vm1211, %v1214, %v1216
        %v1218 = vsel %vm1210, %v1197, %v1200
        %v1219 = vsel %vm1213, %v1206, 920167782
        %v1220 = vsel %vm1212, %v1203, %v1219
        %v1221 = vsel %vm1211, %v1218, %v1220
        %v1222 = vsel %vm1210, %v1200, %v1203
        %v1223 = vsel %vm1213, %v1209, 1326507024
        %v1224 = vsel %vm1212, %v1206, %v1223
        %v1225 = vsel %vm1211, %v1222, %v1224
        %v1226 = vshll.u32 %v1186, 8
        %v1227 = vmul.u32.u64.compose %v1226, %v1225
        %v1228 = vextract.low.u32 %v1227
        %v1229 = vextract.high.u32 %v1227
        %v1230 = vmul.u32.u64.compose %v1226, %v1221
        %v1231 = vextract.low.u32 %v1230
        %v1232 = vextract.high.u32 %v1230
        %v1233 = vmul.u32 %v1226, %v1217
        %v1234 = vadd.s32 %v1229, %v1231
        %vm1235 = vc.u32 %v1229, %v1231
        %v1236 = vadd.s32 %v1232, 1
        %v1237 = vsel %vm1235, %v1236, %v1232
        %v1238 = vadd.s32 %v1233, %v1237
        %v1239 = vadd.s32 %v1238, 536870912
        %v1240 = vshrl.u32 %v1239, 30
        %v1241 = vshll.u32 %v1240, 30
        %v1242 = vsub.s32 %v1238, %v1241
        %vm1243 = vcmp.lt.s32.totalorder %v1242, 0
        %v1244 = vsub.s32 0, %v1242
        %v1245 = vsel %vm1243, %v1244, %v1242
        %v1246 = vclz %v1245
        %v1247 = vsub.s32 %v1246, 2
        %vm1248 = vcmp.gt.s32.totalorder 0, %v1247
        %v1249 = vsel %vm1248, 0, %v1247
        %v1250 = vsub.s32 32, %v1249
        %v1251 = vshll.u32 %v1242, %v1249
        %v1252 = vshrl.u32 %v1234, %v1250
        %v1253 = vor.u32 %v1251, %v1252
        %v1254 = vsub.s32 4294967266, %v1249
        %v1255 = vadd.s32 %v1254, 127
        %v1256 = vshll.u32 %v1255, 23
        %v1257 = vor.u32 4788187, %v1256
        %v1258 = vand.u32 2147483647, %v1257
        %v1260 = vcvt.s32.f32 %v1253
        %v1261 = vmul.f32 %v1260, %v1258
        %v1262 = vxor.u32 %v1261, 2147483648
        %v1263 = vsel %vm1180, %v1262, %v1261
        %v1264 = vsub.s32 4, %v1240
        %v1265 = vsel %vm1180, %v1264, %v1240
        %v1266 = vsel %vm1179, %v544, %v1263
        %v1267 = vsel %vm1179, 0, %v1265
        %v1268 = vcosq.f32.pop %v1266
        %v1269 = vsinq.f32.pop %v1266
        %vm1270 = vweird.f32 %v544
        %v1271 = vadd.s32 %v1267, 3
        %v1272 = vand.u32 %v1271, 3
        %vm1273 = vcmp.lt.s32.totalorder %v1272, 2
        %vm1274 = vcmp.eq.s32.totalorder %v1272, 0
        %v1275 = vxor.u32 %v1269, 2147483648
        %v1276 = vsel %vm1274, %v1268, %v1275
        %vm1277 = vcmp.eq.s32.totalorder %v1272, 2
        %v1278 = vxor.u32 %v1268, 2147483648
        %v1279 = vsel %vm1277, %v1278, %v1269
        %v1280 = vsel %vm1273, %v1276, %v1279
        %v1281 = vsel %vm1270, nan, %v1280
        %v1282 = vand.u32 2147483647, %v545
        %vm1283 = vcmp.le.f32.partialorder %v1282, 0.7853982
        %vm1284 = vcmp.lt.s32.totalorder %v545, 0
        %v1285 = vand.u32 %v545, 2139095040
        %v1286 = vshrl.u32 %v1285, 23
        %v1287 = vsub.s32 %v1286, 127
        %v1288 = vand.u32 2147483647, %v545
        %v1289 = vand.u32 %v1288, 8388607
        %v1290 = vor.u32 %v1289, 8388608
        %v1291 = vsub.s32 0, %v1290
        %v1292 = vadd.s32 %v1287, 1
        %vm1293 = vcmp.gt.s32.totalorder %v1292, 0
        %v1294 = vsel %vm1293, %v1292, 0
        %v1295 = vshrl.u32 %v1294, 5
        %v1296 = vand.u32 %v1294, 31
        %v1297 = vsub.s32 32, %v1296
        %v1298 = vshrl.u32 683565275, %v1297
        %v1299 = vshll.u32 683565275, %v1296
        %v1300 = vshrl.u32 2475754826, %v1297
        %v1301 = vor.u32 %v1299, %v1300
        %v1302 = vshll.u32 2475754826, %v1296
        %v1303 = vshrl.u32 2131351028, %v1297
        %v1304 = vor.u32 %v1302, %v1303
        %v1305 = vshll.u32 2131351028, %v1296
        %v1306 = vshrl.u32 2102212464, %v1297
        %v1307 = vor.u32 %v1305, %v1306
        %v1308 = vshll.u32 2102212464, %v1296
        %v1309 = vshrl.u32 920167782, %v1297
        %v1310 = vor.u32 %v1308, %v1309
        %v1311 = vshll.u32 920167782, %v1296
        %v1312 = vshrl.u32 1326507024, %v1297
        %v1313 = vor.u32 %v1311, %v1312
        %vm1314 = vcmp.lt.s32.totalorder %v1295, 1
        %vm1315 = vcmp.lt.s32.totalorder %v1295, 2
        %vm1316 = vcmp.lt.s32.totalorder %v1295, 3
        %vm1317 = vcmp.lt.s32.totalorder %v1295, 4
        %v1318 = vsel %vm1314, %v1298, %v1301
        %v1319 = vsel %vm1317, %v1307, 2102212464
        %v1320 = vsel %vm1316, %v1304, %v1319
        %v1321 = vsel %vm1315, %v1318, %v1320
        %v1322 = vsel %vm1314, %v1301, %v1304
        %v1323 = vsel %vm1317, %v1310, 920167782
        %v1324 = vsel %vm1316, %v1307, %v1323
        %v1325 = vsel %vm1315, %v1322, %v1324
        %v1326 = vsel %vm1314, %v1304, %v1307
        %v1327 = vsel %vm1317, %v1313, 1326507024
        %v1328 = vsel %vm1316, %v1310, %v1327
        %v1329 = vsel %vm1315, %v1326, %v1328
        %v1330 = vshll.u32 %v1290, 8
        %v1331 = vmul.u32.u64.compose %v1330, %v1329
        %v1332 = vextract.low.u32 %v1331
        %v1333 = vextract.high.u32 %v1331
        %v1334 = vmul.u32.u64.compose %v1330, %v1325
        %v1335 = vextract.low.u32 %v1334
        %v1336 = vextract.high.u32 %v1334
        %v1337 = vmul.u32 %v1330, %v1321
        %v1338 = vadd.s32 %v1333, %v1335
        %vm1339 = vc.u32 %v1333, %v1335
        %v1340 = vadd.s32 %v1336, 1
        %v1341 = vsel %vm1339, %v1340, %v1336
        %v1342 = vadd.s32 %v1337, %v1341
        %v1343 = vadd.s32 %v1342, 536870912
        %v1344 = vshrl.u32 %v1343, 30
        %v1345 = vshll.u32 %v1344, 30
        %v1346 = vsub.s32 %v1342, %v1345
        %vm1347 = vcmp.lt.s32.totalorder %v1346, 0
        %v1348 = vsub.s32 0, %v1346
        %v1349 = vsel %vm1347, %v1348, %v1346
        %v1350 = vclz %v1349
        %v1351 = vsub.s32 %v1350, 2
        %vm1352 = vcmp.gt.s32.totalorder 0, %v1351
        %v1353 = vsel %vm1352, 0, %v1351
        %v1354 = vsub.s32 32, %v1353
        %v1355 = vshll.u32 %v1346, %v1353
        %v1356 = vshrl.u32 %v1338, %v1354
        %v1357 = vor.u32 %v1355, %v1356
        %v1358 = vsub.s32 4294967266, %v1353
        %v1359 = vadd.s32 %v1358, 127
        %v1360 = vshll.u32 %v1359, 23
        %v1361 = vor.u32 4788187, %v1360
        %v1362 = vand.u32 2147483647, %v1361
        %v1364 = vcvt.s32.f32 %v1357
        %v1365 = vmul.f32 %v1364, %v1362
        %v1366 = vxor.u32 %v1365, 2147483648
        %v1367 = vsel %vm1284, %v1366, %v1365
        %v1368 = vsub.s32 4, %v1344
        %v1369 = vsel %vm1284, %v1368, %v1344
        %v1370 = vsel %vm1283, %v545, %v1367
        %v1371 = vsel %vm1283, 0, %v1369
        %v1372 = vcosq.f32.pop %v1370
        %v1373 = vsinq.f32.pop %v1370
        %vm1374 = vweird.f32 %v545
        %v1375 = vadd.s32 %v1371, 3
        %v1376 = vand.u32 %v1375, 3
        %vm1377 = vcmp.lt.s32.totalorder %v1376, 2
        %vm1378 = vcmp.eq.s32.totalorder %v1376, 0
        %v1379 = vxor.u32 %v1373, 2147483648
        %v1380 = vsel %vm1378, %v1372, %v1379
        %vm1381 = vcmp.eq.s32.totalorder %v1376, 2
        %v1382 = vxor.u32 %v1372, 2147483648
        %v1383 = vsel %vm1381, %v1382, %v1373
        %v1384 = vsel %vm1377, %v1380, %v1383
        %v1385 = vsel %vm1374, nan, %v1384
        %v1386 = vmul.f32 %v546, %v657
        %v1387 = vmul.f32 %v547, %v761
        %v1388 = vmul.f32 %v548, %v865
        %v1389 = vmul.f32 %v549, %v969
        %v1390 = vmul.f32 %v550, %v1073
        %v1391 = vmul.f32 %v551, %v1177
        %v1392 = vmul.f32 %v552, %v1281
        %v1393 = vmul.f32 %v553, %v1385
        %1394 = vst [vmem:[%s204] sm:$0xff] %v1386
        %1395 = vst [vmem:[%s204 + $0x8] sm:$0xff] %v1387
        %1396 = vst [vmem:[%s204 + $0x10] sm:$0xff] %v1388
        %1397 = vst [vmem:[%s204 + $0x18] sm:$0xff] %v1389
        %1398 = vst [vmem:[%s204 + $0x20] sm:$0xff] %v1390
        %1399 = vst [vmem:[%s204 + $0x28] sm:$0xff] %v1391
        %1400 = vst [vmem:[%s204 + $0x30] sm:$0xff] %v1392
        %1401 = vst [vmem:[%s204 + $0x38] sm:$0xff] %v1393
        %s1402 = sand.u32 %s114, 1
        %s1403 = scalar_lea.sflag [#allocation4], %s1402
        %s1404 = sand.u32 %s114, 1
        %s1405 = smul.addr %s1404, 64
        %s1406 = scalar_lea.vmem [#allocation3], %s1405
        // Predicated region
        $region37: #{tpu_custom_call.1} parent=31 // pred_check
          %p1407 = pneg %p124
        $region38: #{tpu_custom_call.1} parent=31 // pred_check_branch
          %1409 = sbr.rel (%p1407) target = $region40
        $region39: #{tpu_custom_call.1} parent=31 // pred_region
          %s1410 = smul.u32 2, %s21
          %s1412 = ssub.s32 1024, 1024
          %1413 = vsyncadd %s1403, %s1412
          %s1414 = smul.addr %s22, 8
          %s1415 = sadd.s32 %s1410, %s1414
          %s1416 = smul.addr %s1415, 128
          %s1417 = scalar_lea.hbm %s3, %s1416
          %s1418 = sshll.u32 %s1406, 4
          %s1419 = int_to_ptr.vmem [resolvable:$true] %s1418
          %1424 = dma.vmem_to_hbm [thread:$0]  %s1419, 1024, %s1417, %s1403, 256, 256, 16
        $region40: #{tpu_custom_call.1} parent=31 // pred_fallthru
          _
      $region32: #{tpu_custom_call.1} parent=5 // pred_fallthru
        _
      %p1425 = scmp.le.s32.totalorder 2, %s12
      // Predicated region
      $region41: #{tpu_custom_call.1} parent=5 // pred_check
        %p1426 = pneg %p1425
      $region42: #{tpu_custom_call.1} parent=5 // pred_check_branch
        %1428 = sbr.rel (%p1426) target = $region44
      $region43: #{tpu_custom_call.1} parent=5 // pred_region
        %s1429 = ssub.s32 %s12, 2
        // Predicated region
        $region45: #{tpu_custom_call.1} parent=43 // pred_check
          %p1430 = pneg %p130
        $region46: #{tpu_custom_call.1} parent=43 // pred_check_branch
          %1432 = sbr.rel (%p1430) target = $region48
        $region47: #{tpu_custom_call.1} parent=43 // pred_region
          %s1433 = sand.u32 %s115, 1
          %s1434 = scalar_lea.sflag [#allocation4], %s1433
          %s1435 = sand.u32 %s115, 1
          %s1436 = smul.addr %s1435, 64
          %s1437 = scalar_lea.vmem [#allocation3], %s1436
          %1438 = dma.done %s1434, 1024
        $region48: #{tpu_custom_call.1} parent=43 // pred_fallthru
          _
      $region44: #{tpu_custom_call.1} parent=5 // pred_fallthru
        _
    $region6: #{tpu_custom_call.1} parent=1 // loop_footer
      %s16 = sadd.s32 1, %s12
    $region7: #{tpu_custom_call.1} parent=1 // loop_footer_branch
      %11 = sbr.rel target = $region3
    $region8: #{tpu_custom_call.1} parent=1 // loop_exit
      _
    %1439 = vsyncpa [#allocation4], 1
    %s1440 = scalar_lea.sflag [#allocation4], 1
    %1441 = vsyncpa %s1440, 1

</llo_original>
